<compile_context>
chip_gen: v5e
topology: v5e:2x2
jax: 0.10.0
libtpu: 0.0.40
codegen_flags: <defaults>
</compile_context>

<pallas_src>
import functools

import jax
import jax.numpy as jnp
from jax.experimental import pallas as pl
from jax.experimental.pallas import tpu as pltpu

HIDDEN = 128


def _round_up(n, m):
    return ((n + m - 1) // m) * m


def qnetwork_kernel(x_ref, w_ref, b_ref, out_ref, *, s_pad, action_size, batch):
    H = HIDDEN

    # Static, tile-aligned views into the packed parameter slabs (s_pad is a multiple of 16,
    # so every row boundary is bf16-sublane aligned and every column boundary is lane aligned).
    w1 = w_ref[0:s_pad, 0:H]                     # [S_pad, 128]  feature layer
    wh = w_ref[s_pad:s_pad + H, :]               # [128, 256]    fused adv|val hidden layer
    wo = w_ref[s_pad + H:s_pad + 3 * H, 0:H]     # [256, 128]    block-diagonal output heads
    b1 = b_ref[0:1, 0:H]
    bh = b_ref[0:1, H:3 * H]
    bo = b_ref[0:1, 3 * H:4 * H]

    x = x_ref[...]                                                  # bf16 [B_pad, S_pad]

    # feature = ReLU(x @ W1 + b1)
    h = jnp.dot(x, w1, preferred_element_type=jnp.float32) + b1
    h = jnp.maximum(h, 0.0)

    # fused hidden layers of both branches: [adv_hidden | val_hidden] in one 256-wide matmul
    hv = jnp.dot(h.astype(jnp.bfloat16), wh, preferred_element_type=jnp.float32) + bh
    hv = jnp.maximum(hv, 0.0)                                       # [B_pad, 256]

    # fused block-diagonal output heads: lanes 0:A = advantage, lane A = value, rest zero
    ov = jnp.dot(hv.astype(jnp.bfloat16), wo, preferred_element_type=jnp.float32) + bo

    # dueling combine: value + advantage - advantage.mean()  (global mean, pad masked out)
    lane = jax.lax.broadcasted_iota(jnp.int32, ov.shape, 1)
    row = jax.lax.broadcasted_iota(jnp.int32, ov.shape, 0)
    adv_mask = (lane < action_size) & (row < batch)
    adv_mean = jnp.sum(jnp.where(adv_mask, ov, 0.0)) / (batch * action_size)
    val = jnp.sum(jnp.where(lane == action_size, ov, 0.0), axis=1, keepdims=True)

    # lane-dense [B_pad, 128] store; only lanes 0:A are meaningful (sliced in the wrapper)
    out_ref[...] = (ov + val - adv_mean).astype(out_ref.dtype)


def pack_params(params, state_size, action_size):
    """Pack the 10 Linear tensors into one bf16 weight slab + one f32 bias row (2 DMAs)."""
    H = HIDDEN
    A = action_size
    s_pad = _round_up(state_size, 16)  # bf16 sublane-pair alignment for in-kernel row slices

    w1_blk = jnp.zeros((s_pad, 2 * H), jnp.float32).at[:state_size, :H].set(params["w1"])
    wh_blk = jnp.concatenate([params["wa1"], params["wv1"]], axis=1)            # [128, 256]
    wo_blk = (jnp.zeros((2 * H, 2 * H), jnp.float32)
              .at[:H, :A].set(params["wa2"])          # advantage head -> lanes 0:A
              .at[H:, A:A + 1].set(params["wv2"]))    # value head     -> lane A
    wslab = jnp.concatenate([w1_blk, wh_blk, wo_blk], axis=0).astype(jnp.bfloat16)

    bslab = (jnp.zeros((1, 4 * H), jnp.float32)
             .at[:, 0:H].set(params["b1"])
             .at[:, H:2 * H].set(params["ba1"])
             .at[:, 2 * H:3 * H].set(params["bv1"])
             .at[:, 3 * H:3 * H + A].set(params["ba2"])
             .at[:, 3 * H + A:3 * H + A + 1].set(params["bv2"]))
    return wslab, bslab, s_pad


def qnetwork_forward(x, wslab, bslab, *, state_size, action_size, s_pad):
    B = x.shape[0]
    B_pad = _round_up(max(B, 8), 8)

    x_pad = jnp.zeros((B_pad, s_pad), jnp.float32).at[:B, :state_size].set(x)
    x_pad = x_pad.astype(jnp.bfloat16)

    vmem = pl.BlockSpec(memory_space=pltpu.MemorySpace.VMEM)
    out = pl.pallas_call(
        functools.partial(qnetwork_kernel, s_pad=s_pad,
                          action_size=action_size, batch=B),
        out_shape=jax.ShapeDtypeStruct((B_pad, HIDDEN), jnp.float32),
        in_specs=[vmem, vmem, vmem],
        out_specs=vmem,
    )(x_pad, wslab, bslab)
    return out[:B, :action_size]


def init_params(key, state_size, action_size, hidden=HIDDEN):
    """Deterministic init mimicking torch.nn.Linear's U(-1/sqrt(fan_in), 1/sqrt(fan_in)).
    Weights stored as [in, out] (transposed vs. PyTorch (out, in))."""
    def linear(k, fan_in, fan_out):
        kw, kb = jax.random.split(k)
        bound = 1.0 / jnp.sqrt(fan_in)
        w = jax.random.uniform(kw, (fan_in, fan_out), jnp.float32, -bound, bound)
        b = jax.random.uniform(kb, (1, fan_out), jnp.float32, -bound, bound)
        return w, b

    keys = jax.random.split(key, 5)
    w1, b1 = linear(keys[0], state_size, hidden)     # feature
    wa1, ba1 = linear(keys[1], hidden, hidden)       # advantage hidden
    wa2, ba2 = linear(keys[2], hidden, action_size)  # advantage out
    wv1, bv1 = linear(keys[3], hidden, hidden)       # value hidden
    wv2, bv2 = linear(keys[4], hidden, 1)            # value out
    return dict(w1=w1, b1=b1, wa1=wa1, ba1=ba1, wa2=wa2, ba2=ba2,
                wv1=wv1, bv1=bv1, wv2=wv2, bv2=bv2)


def qnetwork_reference(x, p):
    """Pure-JAX f32 reference of the PyTorch forward for verification."""
    h = jnp.maximum(x @ p["w1"] + p["b1"], 0.0)
    adv = jnp.maximum(h @ p["wa1"] + p["ba1"], 0.0) @ p["wa2"] + p["ba2"]
    val = jnp.maximum(h @ p["wv1"] + p["bv1"], 0.0) @ p["wv2"] + p["bv2"]
    return val + adv - adv.mean()


if __name__ == "__main__":
    STATE_SIZE = 8
    ACTION_SIZE = 4
    BATCH = 2

    key = jax.random.PRNGKey(0)
    k_params, k_x = jax.random.split(key)
    params = init_params(k_params, STATE_SIZE, ACTION_SIZE)
    x = jax.random.normal(k_x, (BATCH, STATE_SIZE), jnp.float32)

    # pack once (weights stay packed for the lifetime of the network)
    wslab, bslab, s_pad = pack_params(params, STATE_SIZE, ACTION_SIZE)

    q = qnetwork_forward(x, wslab, bslab, state_size=STATE_SIZE,
                         action_size=ACTION_SIZE, s_pad=s_pad)
    q = jax.block_until_ready(q)

    q_ref = qnetwork_reference(x, params)
    assert q.shape == (BATCH, ACTION_SIZE)
    # bf16 weights/activations with f32 accumulation vs. full-f32 reference: error ~1e-3
    assert jnp.allclose(q, q_ref, atol=2e-2, rtol=2e-2), (q, q_ref)

    print("KERNEL_OK")
</pallas_src>

<mosaic_0001>
module attributes {stable_mosaic.version = 11 : i64} {
  func.func @qnetwork_kernel(%arg0: memref<8x16xbf16, #tpu.memory_space<vmem>>, %arg1: memref<400x256xbf16, #tpu.memory_space<vmem>>, %arg2: memref<1x512xf32, #tpu.memory_space<vmem>>, %arg3: memref<8x128xf32, #tpu.memory_space<vmem>>) attributes {dimension_semantics = [], scalar_prefetch = 0 : i64, scratch_operands = 0 : i64, tpu.core_type = #tpu.core_type<tc>} {
    %c0 = arith.constant 0 : index
    %c0_0 = arith.constant 0 : index
    %0 = vector.load %arg1[%c0, %c0_0] : memref<400x256xbf16, #tpu.memory_space<vmem>>, vector<16x128xbf16>
    %c16 = arith.constant 16 : index
    %c0_1 = arith.constant 0 : index
    %1 = vector.load %arg1[%c16, %c0_1] : memref<400x256xbf16, #tpu.memory_space<vmem>>, vector<128x256xbf16>
    %c144 = arith.constant 144 : index
    %c0_2 = arith.constant 0 : index
    %2 = vector.load %arg1[%c144, %c0_2] : memref<400x256xbf16, #tpu.memory_space<vmem>>, vector<256x128xbf16>
    %c0_3 = arith.constant 0 : index
    %c0_4 = arith.constant 0 : index
    %3 = vector.load %arg2[%c0_3, %c0_4] : memref<1x512xf32, #tpu.memory_space<vmem>>, vector<1x128xf32>
    %c0_5 = arith.constant 0 : index
    %c128 = arith.constant 128 : index
    %4 = vector.load %arg2[%c0_5, %c128] : memref<1x512xf32, #tpu.memory_space<vmem>>, vector<1x256xf32>
    %c0_6 = arith.constant 0 : index
    %c384 = arith.constant 384 : index
    %5 = vector.load %arg2[%c0_6, %c384] : memref<1x512xf32, #tpu.memory_space<vmem>>, vector<1x128xf32>
    %c0_7 = arith.constant 0 : index
    %c0_8 = arith.constant 0 : index
    %6 = vector.load %arg0[%c0_7, %c0_8] : memref<8x16xbf16, #tpu.memory_space<vmem>>, vector<8x16xbf16>
    %cst = arith.constant dense<0.000000e+00> : vector<8x128xf32>
    %7 = tpu.matmul %6, %0, %cst {dimension_numbers = #tpu.dot_dimension_numbers<[1], [0], [0], [1], [0, 0, 1, 1], [], []>} : vector<8x16xbf16>, vector<16x128xbf16>, vector<8x128xf32> -> vector<8x128xf32>
    %8 = vector.broadcast %3 : vector<1x128xf32> to vector<8x128xf32>
    %9 = arith.addf %7, %8 : vector<8x128xf32>
    %cst_9 = arith.constant 0.000000e+00 : f32
    %10 = vector.broadcast %cst_9 : f32 to vector<8x128xf32>
    %11 = arith.maximumf %9, %10 : vector<8x128xf32>
    %12 = arith.truncf %11 : vector<8x128xf32> to vector<8x128xbf16>
    %cst_10 = arith.constant dense<0.000000e+00> : vector<8x256xf32>
    %13 = tpu.matmul %12, %1, %cst_10 {dimension_numbers = #tpu.dot_dimension_numbers<[1], [0], [0], [1], [0, 0, 1, 1], [], []>} : vector<8x128xbf16>, vector<128x256xbf16>, vector<8x256xf32> -> vector<8x256xf32>
    %14 = vector.broadcast %4 : vector<1x256xf32> to vector<8x256xf32>
    %15 = arith.addf %13, %14 : vector<8x256xf32>
    %cst_11 = arith.constant 0.000000e+00 : f32
    %16 = vector.broadcast %cst_11 : f32 to vector<8x256xf32>
    %17 = arith.maximumf %15, %16 : vector<8x256xf32>
    %18 = arith.truncf %17 : vector<8x256xf32> to vector<8x256xbf16>
    %cst_12 = arith.constant dense<0.000000e+00> : vector<8x128xf32>
    %19 = tpu.matmul %18, %2, %cst_12 {dimension_numbers = #tpu.dot_dimension_numbers<[1], [0], [0], [1], [0, 0, 1, 1], [], []>} : vector<8x256xbf16>, vector<256x128xbf16>, vector<8x128xf32> -> vector<8x128xf32>
    %20 = vector.broadcast %5 : vector<1x128xf32> to vector<8x128xf32>
    %21 = arith.addf %19, %20 : vector<8x128xf32>
    %22 = tpu.iota {dimensions = array<i32: 1>} : vector<8x128xi32>
    %23 = tpu.iota {dimensions = array<i32: 0>} : vector<8x128xi32>
    %c4_i32 = arith.constant 4 : i32
    %24 = vector.broadcast %c4_i32 : i32 to vector<8x128xi32>
    %25 = arith.cmpi slt, %22, %24 : vector<8x128xi32>
    %c2_i32 = arith.constant 2 : i32
    %26 = vector.broadcast %c2_i32 : i32 to vector<8x128xi32>
    %27 = arith.cmpi slt, %23, %26 : vector<8x128xi32>
    %28 = arith.andi %25, %27 : vector<8x128xi1>
    %cst_13 = arith.constant 0.000000e+00 : f32
    %29 = vector.broadcast %cst_13 : f32 to vector<8x128xf32>
    %30 = arith.select %28, %21, %29 : vector<8x128xi1>, vector<8x128xf32>
    %31 = vector.shape_cast %30 : vector<8x128xf32> to vector<1x8x128xf32>
    %cst_14 = arith.constant dense<0.000000e+00> : vector<1xf32>
    %32 = vector.multi_reduction <add>, %31, %cst_14 [1, 2] : vector<1x8x128xf32> to vector<1xf32>
    %33 = vector.shape_cast %32 : vector<1xf32> to vector<1x1x1xf32>
    %34 = vector.extract %33[0, 0, 0] : f32 from vector<1x1x1xf32>
    %cst_15 = arith.constant 8.000000e+00 : f32
    %35 = arith.divf %34, %cst_15 : f32
    %c4_i32_16 = arith.constant 4 : i32
    %36 = vector.broadcast %c4_i32_16 : i32 to vector<8x128xi32>
    %37 = arith.cmpi eq, %22, %36 : vector<8x128xi32>
    %cst_17 = arith.constant 0.000000e+00 : f32
    %38 = vector.broadcast %cst_17 : f32 to vector<8x128xf32>
    %39 = arith.select %37, %21, %38 : vector<8x128xi1>, vector<8x128xf32>
    %cst_18 = arith.constant dense<0.000000e+00> : vector<8xf32>
    %40 = vector.multi_reduction <add>, %39, %cst_18 [1] : vector<8x128xf32> to vector<8xf32>
    %41 = vector.shape_cast %40 : vector<8xf32> to vector<8x1xf32>
    %42 = vector.broadcast %41 : vector<8x1xf32> to vector<8x128xf32>
    %43 = arith.addf %21, %42 : vector<8x128xf32>
    %44 = vector.broadcast %35 : f32 to vector<8x128xf32>
    %45 = arith.subf %43, %44 : vector<8x128xf32>
    %c0_19 = arith.constant 0 : index
    %c0_20 = arith.constant 0 : index
    %46 = vector.load %arg3[%c0_19, %c0_20] : memref<8x128xf32, #tpu.memory_space<vmem>>, vector<8x128xf32>
    tpu.vector_store %arg3[%c0_19, %c0_20], %45 {strides = array<i32>} : memref<8x128xf32, #tpu.memory_space<vmem>>, vector<8x128xf32>,
    return
  }
}

</mosaic_0001>

<llo_original>
// kernel: tpu_custom_call.1
$region0: #{tpu_custom_call.1}
  #allocation0 [shape = 'u32[]', space=smem, size = 0x4, offset = 0x4, fixed_abs, tag = 'smem constant byte address 0x4 - core index']
  #allocation1 [shape = 'u32[72,128]{1,0:T(1,128)}', space=vmem, size = 0x9000, scoped, tag = 'internal scratch']
  %s0 = inlined_call_operand.hbm [shape: bf16[8,16], index: 0, kind: input, shape index: {}]
  %s1 = inlined_call_operand.hbm [shape: bf16[400,256], index: 1, kind: input, shape index: {}]
  %s2 = inlined_call_operand.hbm [shape: f32[1,512], index: 2, kind: input, shape index: {}]
  %s3 = inlined_call_operand.hbm [shape: f32[8,128], index: 3, kind: output, shape index: {}]
  %s4 = sld [smem:[#allocation0]]
  $region34: #{tpu_custom_call.1} parent=0
    _
  %s6 = ssub.s32 1, %s4
  %s7 = scalar_select 0, %s6, %s4
  $region1: #{tpu_custom_call.1} parent=0
    #allocation2 [shape = 'u8[2048]{0}', space=vmem, size = 0x800, scoped, tag = 'input window, operand 0, single buffered']
    #allocation3 [shape = 's32[1]{0}', space=sflag, size = 0x4, scoped, tag = 'scoped memory for tpu_custom_call.1']
    #allocation4 [shape = 's32[1]{0}', space=sflag, size = 0x4, scoped, tag = 'scoped memory for tpu_custom_call.1']
    #allocation5 [shape = 'u8[204800]{0}', space=vmem, size = 0x32000, scoped, tag = 'input window, operand 1, single buffered']
    #allocation6 [shape = 's32[1]{0}', space=sflag, size = 0x4, scoped, tag = 'scoped memory for tpu_custom_call.1']
    #allocation7 [shape = 'u8[2048]{0}', space=vmem, size = 0x800, scoped, tag = 'input window, operand 2, single buffered']
    #allocation8 [shape = 'u8[4096]{0}', space=vmem, size = 0x1000, scoped, tag = 'output window, operand 0, single buffered']
    %8 = vsyncpa [#allocation3], 0
    %9 = vsyncpa [#allocation6], 0
    %10 = vsyncpa [#allocation4], 0
    // Predicated region
    $region2: #{tpu_custom_call.1} parent=1 // pred_check
      _
    $region3: #{tpu_custom_call.1} parent=1 // pred_check_branch
      %12 = sbr.rel (0) target = $region5
    $region4: #{tpu_custom_call.1} parent=1 // pred_region
      %14 = vsyncadd [#allocation3], 0
      %s16 = sshll.u32 %s0, 4
      %s17 = int_to_ptr.hbm [resolvable:$true] %s16
      %s18 = sshll.u32 [#allocation2], 4
      %s19 = int_to_ptr.vmem [resolvable:$true] %s18
      %21 = dma.hbm_to_vmem [thread:$0]  %s17, 64, %s19, [#allocation3]
    $region5: #{tpu_custom_call.1} parent=1 // pred_fallthru
      _
    // Predicated region
    $region6: #{tpu_custom_call.1} parent=1 // pred_check
      _
    $region7: #{tpu_custom_call.1} parent=1 // pred_check_branch
      %23 = sbr.rel (0) target = $region9
    $region8: #{tpu_custom_call.1} parent=1 // pred_region
      %25 = vsyncadd [#allocation6], 0
      %s26 = sshll.u32 %s1, 4
      %s27 = int_to_ptr.hbm [resolvable:$true] %s26
      %s28 = sshll.u32 [#allocation5], 4
      %s29 = int_to_ptr.vmem [resolvable:$true] %s28
      %34 = dma.hbm_to_vmem [thread:$0]  %s27, 6400, %s29, [#allocation6], 128, 128, 8
    $region9: #{tpu_custom_call.1} parent=1 // pred_fallthru
      _
    // Predicated region
    $region10: #{tpu_custom_call.1} parent=1 // pred_check
      _
    $region11: #{tpu_custom_call.1} parent=1 // pred_check_branch
      %36 = sbr.rel (0) target = $region13
    $region12: #{tpu_custom_call.1} parent=1 // pred_region
      %38 = vsyncadd [#allocation6], 0
      %s40 = sshll.u32 %s2, 4
      %s41 = int_to_ptr.hbm [resolvable:$true] %s40
      %s42 = sshll.u32 [#allocation7], 4
      %s43 = int_to_ptr.vmem [resolvable:$true] %s42
      %45 = dma.hbm_to_vmem [thread:$0]  %s41, 64, %s43, [#allocation6]
    $region13: #{tpu_custom_call.1} parent=1 // pred_fallthru
      _
    // Predicated region
    $region14: #{tpu_custom_call.1} parent=1 // pred_check
      _
    $region15: #{tpu_custom_call.1} parent=1 // pred_check_branch
      %47 = sbr.rel (0) target = $region17
    $region16: #{tpu_custom_call.1} parent=1 // pred_region
      %49 = dma.done [#allocation3], 64
    $region17: #{tpu_custom_call.1} parent=1 // pred_fallthru
      _
    // Predicated region
    $region18: #{tpu_custom_call.1} parent=1 // pred_check
      _
    $region19: #{tpu_custom_call.1} parent=1 // pred_check_branch
      %51 = sbr.rel (0) target = $region21
    $region20: #{tpu_custom_call.1} parent=1 // pred_region
      %53 = dma.done [#allocation6], 6400
    $region21: #{tpu_custom_call.1} parent=1 // pred_fallthru
      _
    // Predicated region
    $region22: #{tpu_custom_call.1} parent=1 // pred_check
      _
    $region23: #{tpu_custom_call.1} parent=1 // pred_check_branch
      %55 = sbr.rel (0) target = $region25
    $region24: #{tpu_custom_call.1} parent=1 // pred_region
      %57 = dma.done [#allocation6], 64
    $region25: #{tpu_custom_call.1} parent=1 // pred_fallthru
      _
    %v59 = vld [vmem:[#allocation5] sm:$0xf]
    %v60 = vld [vmem:[#allocation5 + $0x8] sm:$0xf]
    %v61 = vld [vmem:[#allocation5 + $0x10] sm:$0xff]
    %v62 = vld [vmem:[#allocation5 + $0x18] sm:$0xff]
    %v63 = vld [vmem:[#allocation5 + $0x20] sm:$0xff]
    %v64 = vld [vmem:[#allocation5 + $0x28] sm:$0xff]
    %v65 = vld [vmem:[#allocation5 + $0x30] sm:$0xff]
    %v66 = vld [vmem:[#allocation5 + $0x38] sm:$0xff]
    %v67 = vld [vmem:[#allocation5 + $0x40] sm:$0xff]
    %v68 = vld [vmem:[#allocation5 + $0x48] sm:$0xff]
    %v69 = vld [vmem:[#allocation5 + $0x50] sm:$0xff]
    %v70 = vld [vmem:[#allocation5 + $0x58] sm:$0xff]
    %v71 = vld [vmem:[#allocation5 + $0x60] sm:$0xff]
    %v72 = vld [vmem:[#allocation5 + $0x68] sm:$0xff]
    %v73 = vld [vmem:[#allocation5 + $0x70] sm:$0xff]
    %v74 = vld [vmem:[#allocation5 + $0x78] sm:$0xff]
    %v75 = vld [vmem:[#allocation5 + $0x80] sm:$0xff]
    %v76 = vld [vmem:[#allocation5 + $0x88] sm:$0xff]
    %v77 = vld [vmem:[#allocation5 + $0x90] sm:$0xf]
    %v78 = vld [vmem:[#allocation5 + $0x98] sm:$0xf]
    %v79 = vld [vmem:[#allocation5 + $0xa0] sm:$0xf]
    %v80 = vld [vmem:[#allocation5 + $0xa8] sm:$0xf]
    %v81 = vld [vmem:[#allocation5 + $0xb0] sm:$0xf]
    %v82 = vld [vmem:[#allocation5 + $0xb8] sm:$0xf]
    %v83 = vld [vmem:[#allocation5 + $0xc0] sm:$0xf]
    %v84 = vld [vmem:[#allocation5 + $0xc8] sm:$0xf]
    %v85 = vld [vmem:[#allocation5 + $0xd0] sm:$0xf]
    %v86 = vld [vmem:[#allocation5 + $0xd8] sm:$0xf]
    %v87 = vld [vmem:[#allocation5 + $0xe0] sm:$0xf]
    %v88 = vld [vmem:[#allocation5 + $0xe8] sm:$0xf]
    %v89 = vld [vmem:[#allocation5 + $0xf0] sm:$0xf]
    %v90 = vld [vmem:[#allocation5 + $0xf8] sm:$0xf]
    %v91 = vld [vmem:[#allocation5 + $0x100] sm:$0xf]
    %v92 = vld [vmem:[#allocation5 + $0x108] sm:$0xf]
    %v93 = vld [vmem:[#allocation5 + $0x110] sm:$0xf]
    %v94 = vld [vmem:[#allocation5 + $0x118] sm:$0xf]
    %v95 = vld [vmem:[#allocation5 + $0x120] sm:$0xf]
    %v96 = vld [vmem:[#allocation5 + $0x128] sm:$0xf]
    %v97 = vld [vmem:[#allocation5 + $0x130] sm:$0xf]
    %v98 = vld [vmem:[#allocation5 + $0x138] sm:$0xf]
    %v99 = vld [vmem:[#allocation5 + $0x140] sm:$0xf]
    %v100 = vld [vmem:[#allocation5 + $0x148] sm:$0xf]
    %v101 = vld [vmem:[#allocation5 + $0x150] sm:$0xf]
    %v102 = vld [vmem:[#allocation5 + $0x158] sm:$0xf]
    %v103 = vld [vmem:[#allocation5 + $0x160] sm:$0xf]
    %v104 = vld [vmem:[#allocation5 + $0x168] sm:$0xf]
    %v105 = vld [vmem:[#allocation5 + $0x170] sm:$0xf]
    %v106 = vld [vmem:[#allocation5 + $0x178] sm:$0xf]
    %v107 = vld [vmem:[#allocation5 + $0x180] sm:$0xf]
    %v108 = vld [vmem:[#allocation5 + $0x188] sm:$0xf]
    %v109 = vld [vmem:[#allocation7] sm:$0x1]
    %v110 = vld [vmem:[#allocation7 + $0x1] sm:$0x3]
    %v111 = vld [vmem:[#allocation7 + $0x3] sm:$0x1]
    %v112 = vld [vmem:[#allocation2] sm:$0xf]
    %v114 = vperm.slane %v109, 0
    %v118 = vunpack.c.l.b16 %v59
    %v119 = vunpack.c.l.b16 %v60
    %v120 = vpack.c.b16 %v119, %v118
    %vm122 = vcmask 130048
    %v124 = vsel %vm122, %v112, 0
    %126 = vmatpush.bf16.msra.mxu0 0
    %127 = vmatpush.bf16.msra.mxu0 0
    %128 = vmatpush.bf16.msra.mxu0 0
    %129 = vmatpush.bf16.msra.mxu0 0
    %130 = vmatpush.bf16.msra.mxu0 0
    %131 = vmatpush.bf16.msra.mxu0 0
    %132 = vmatpush.bf16.msra.mxu0 0
    %133 = vmatpush.bf16.msra.mxu0 %v120
    %134 = vmatmul.bf16.gmra.mxu0 %v124
    %v135 = vpop.f32.mrf.mxu0
    %v136 = vadd.f32 %v114, %v135
    %v137 = vpop.f32.mrf.mxu0
    %138 = vdwg.mxu0
    %v139 = vmax.f32 %v136, 0.0
    %v140 = vpack.c.bf16 %v139, %v139
    %v142 = vperm.slane %v110, 0
    %v143 = vperm.slane %v110, 1
    %v162 = vunpack.c.l.b16 %v61
    %v163 = vunpack.c.h.b16 %v61
    %v164 = vunpack.c.l.b16 %v62
    %v165 = vunpack.c.h.b16 %v62
    %v166 = vunpack.c.l.b16 %v63
    %v167 = vunpack.c.h.b16 %v63
    %v168 = vunpack.c.l.b16 %v64
    %v169 = vunpack.c.h.b16 %v64
    %v170 = vunpack.c.l.b16 %v65
    %v171 = vunpack.c.h.b16 %v65
    %v172 = vunpack.c.l.b16 %v66
    %v173 = vunpack.c.h.b16 %v66
    %v174 = vunpack.c.l.b16 %v67
    %v175 = vunpack.c.h.b16 %v67
    %v176 = vunpack.c.l.b16 %v68
    %v177 = vunpack.c.h.b16 %v68
    %v178 = vunpack.c.l.b16 %v69
    %v179 = vunpack.c.h.b16 %v69
    %v180 = vunpack.c.l.b16 %v70
    %v181 = vunpack.c.h.b16 %v70
    %v182 = vunpack.c.l.b16 %v71
    %v183 = vunpack.c.h.b16 %v71
    %v184 = vunpack.c.l.b16 %v72
    %v185 = vunpack.c.h.b16 %v72
    %v186 = vunpack.c.l.b16 %v73
    %v187 = vunpack.c.h.b16 %v73
    %v188 = vunpack.c.l.b16 %v74
    %v189 = vunpack.c.h.b16 %v74
    %v190 = vunpack.c.l.b16 %v75
    %v191 = vunpack.c.h.b16 %v75
    %v192 = vunpack.c.l.b16 %v76
    %v193 = vunpack.c.h.b16 %v76
    %v194 = vpack.c.b16 %v164, %v162
    %v195 = vpack.c.b16 %v165, %v163
    %v196 = vpack.c.b16 %v168, %v166
    %v197 = vpack.c.b16 %v169, %v167
    %v198 = vpack.c.b16 %v172, %v170
    %v199 = vpack.c.b16 %v173, %v171
    %v200 = vpack.c.b16 %v176, %v174
    %v201 = vpack.c.b16 %v177, %v175
    %v202 = vpack.c.b16 %v180, %v178
    %v203 = vpack.c.b16 %v181, %v179
    %v204 = vpack.c.b16 %v184, %v182
    %v205 = vpack.c.b16 %v185, %v183
    %v206 = vpack.c.b16 %v188, %v186
    %v207 = vpack.c.b16 %v189, %v187
    %v208 = vpack.c.b16 %v192, %v190
    %v209 = vpack.c.b16 %v193, %v191
    %226 = vmatpush.bf16.msra.mxu0 %v208
    %227 = vmatpush.bf16.msra.mxu0 %v206
    %228 = vmatpush.bf16.msra.mxu0 %v204
    %229 = vmatpush.bf16.msra.mxu0 %v202
    %230 = vmatpush.bf16.msra.mxu0 %v200
    %231 = vmatpush.bf16.msra.mxu0 %v198
    %232 = vmatpush.bf16.msra.mxu0 %v196
    %233 = vmatpush.bf16.msra.mxu0 %v194
    %234 = vmatmul.bf16.gmra.mxu0 %v140
    %v235 = vpop.f32.mrf.mxu0
    %v236 = vadd.f32 %v142, %v235
    %v237 = vpop.f32.mrf.mxu0
    %238 = vdwg.mxu0
    %239 = vmatpush.bf16.msra.mxu0 %v209
    %240 = vmatpush.bf16.msra.mxu0 %v207
    %241 = vmatpush.bf16.msra.mxu0 %v205
    %242 = vmatpush.bf16.msra.mxu0 %v203
    %243 = vmatpush.bf16.msra.mxu0 %v201
    %244 = vmatpush.bf16.msra.mxu0 %v199
    %245 = vmatpush.bf16.msra.mxu0 %v197
    %246 = vmatpush.bf16.msra.mxu0 %v195
    %247 = vmatmul.bf16.gmra.mxu0 %v140
    %v248 = vpop.f32.mrf.mxu0
    %v249 = vadd.f32 %v143, %v248
    %v250 = vpop.f32.mrf.mxu0
    %251 = vdwg.mxu0
    %v252 = vmax.f32 %v236, 0.0
    %v253 = vmax.f32 %v249, 0.0
    %v254 = vpack.c.bf16 %v252, %v252
    %v255 = vpack.c.bf16 %v253, %v253
    %v257 = vperm.slane %v111, 0
    %v291 = vunpack.c.l.b16 %v77
    %v292 = vunpack.c.l.b16 %v78
    %v293 = vunpack.c.l.b16 %v79
    %v294 = vunpack.c.l.b16 %v80
    %v295 = vunpack.c.l.b16 %v81
    %v296 = vunpack.c.l.b16 %v82
    %v297 = vunpack.c.l.b16 %v83
    %v298 = vunpack.c.l.b16 %v84
    %v299 = vunpack.c.l.b16 %v85
    %v300 = vunpack.c.l.b16 %v86
    %v301 = vunpack.c.l.b16 %v87
    %v302 = vunpack.c.l.b16 %v88
    %v303 = vunpack.c.l.b16 %v89
    %v304 = vunpack.c.l.b16 %v90
    %v305 = vunpack.c.l.b16 %v91
    %v306 = vunpack.c.l.b16 %v92
    %v307 = vunpack.c.l.b16 %v93
    %v308 = vunpack.c.l.b16 %v94
    %v309 = vunpack.c.l.b16 %v95
    %v310 = vunpack.c.l.b16 %v96
    %v311 = vunpack.c.l.b16 %v97
    %v312 = vunpack.c.l.b16 %v98
    %v313 = vunpack.c.l.b16 %v99
    %v314 = vunpack.c.l.b16 %v100
    %v315 = vunpack.c.l.b16 %v101
    %v316 = vunpack.c.l.b16 %v102
    %v317 = vunpack.c.l.b16 %v103
    %v318 = vunpack.c.l.b16 %v104
    %v319 = vunpack.c.l.b16 %v105
    %v320 = vunpack.c.l.b16 %v106
    %v321 = vunpack.c.l.b16 %v107
    %v322 = vunpack.c.l.b16 %v108
    %v323 = vpack.c.b16 %v292, %v291
    %v324 = vpack.c.b16 %v294, %v293
    %v325 = vpack.c.b16 %v296, %v295
    %v326 = vpack.c.b16 %v298, %v297
    %v327 = vpack.c.b16 %v300, %v299
    %v328 = vpack.c.b16 %v302, %v301
    %v329 = vpack.c.b16 %v304, %v303
    %v330 = vpack.c.b16 %v306, %v305
    %v331 = vpack.c.b16 %v308, %v307
    %v332 = vpack.c.b16 %v310, %v309
    %v333 = vpack.c.b16 %v312, %v311
    %v334 = vpack.c.b16 %v314, %v313
    %v335 = vpack.c.b16 %v316, %v315
    %v336 = vpack.c.b16 %v318, %v317
    %v337 = vpack.c.b16 %v320, %v319
    %v338 = vpack.c.b16 %v322, %v321
    %355 = vmatpush.bf16.msra.mxu0 %v330
    %356 = vmatpush.bf16.msra.mxu0 %v329
    %357 = vmatpush.bf16.msra.mxu0 %v328
    %358 = vmatpush.bf16.msra.mxu0 %v327
    %359 = vmatpush.bf16.msra.mxu0 %v326
    %360 = vmatpush.bf16.msra.mxu0 %v325
    %361 = vmatpush.bf16.msra.mxu0 %v324
    %362 = vmatpush.bf16.msra.mxu0 %v323
    %363 = vmatmul.bf16.gmra.mxu0 %v254
    %v364 = vpop.f32.mrf.mxu0
    %v365 = vadd.f32 %v257, %v364
    %v366 = vpop.f32.mrf.mxu0
    %367 = vdwg.mxu0
    %368 = vmatpush.bf16.msra.mxu0 %v338
    %369 = vmatpush.bf16.msra.mxu0 %v337
    %370 = vmatpush.bf16.msra.mxu0 %v336
    %371 = vmatpush.bf16.msra.mxu0 %v335
    %372 = vmatpush.bf16.msra.mxu0 %v334
    %373 = vmatpush.bf16.msra.mxu0 %v333
    %374 = vmatpush.bf16.msra.mxu0 %v332
    %375 = vmatpush.bf16.msra.mxu0 %v331
    %376 = vmatmul.bf16.gmra.mxu0 %v255
    %v377 = vpop.f32.mrf.mxu0
    %v378 = vadd.f32 %v365, %v377
    %v379 = vpop.f32.mrf.mxu0
    %380 = vdwg.mxu0
    %v381 = vlaneseq
    %v382 = vand.u32 %v381, 127
    %v383 = vlaneseq
    %v384 = vshrl.u32 %v383, 7
    %vm385 = vcmp.lt.s32.totalorder %v382, 4
    %vm386 = vcmp.lt.s32.totalorder %v384, 2
    %vm387 = vmand %vm385, %vm386
    %v388 = vsel %vm387, %v378, 0.0
    %389 = vadd.xlane.f32.xlu0 %v388
    %v390 = vpop.xlane.xlu0 %389
    %v391 = vrot.slane %v390, 4
    %v392 = vadd.f32 %v390, %v391
    %v393 = vrot.slane %v392, 2
    %v394 = vadd.f32 %v392, %v393
    %v395 = vrot.slane %v394, 1
    %v396 = vadd.f32 %v394, %v395
    %s397 = vtos %v396
    %v398 = vrcp.pop 8.0
    %v399 = vmul.f32 8.0, %v398
    %v400 = vsub.f32 1.0, %v399
    %v401 = vmul.f32 %v398, %v400
    %v402 = vadd.f32 %v398, %v401
    %vm403 = vweird.f32 %v398
    %v404 = vsel %vm403, %v398, %v402
    %s405 = vtos %v404
    %s406 = smul.f32 %s397, %s405
    %vm407 = vcmp.eq.s32.totalorder %v382, 4
    %v408 = vsel %vm407, %v378, 0.0
    %409 = vadd.xlane.f32.xlu0 %v408
    %v410 = vpop.xlane.xlu0 %409
    %v411 = vadd.f32 %v378, %v410
    %v412 = vstv %s406
    %v413 = vsub.f32 %v411, %v412
    %414 = vst [vmem:[#allocation8] sm:$0xff] %v413
    // Predicated region
    $region26: #{tpu_custom_call.1} parent=1 // pred_check
      _
    $region27: #{tpu_custom_call.1} parent=1 // pred_check_branch
      %416 = sbr.rel (0) target = $region29
    $region28: #{tpu_custom_call.1} parent=1 // pred_region
      %418 = vsyncadd [#allocation4], 0
      %s420 = sshll.u32 [#allocation8], 4
      %s421 = int_to_ptr.vmem [resolvable:$true] %s420
      %s422 = sshll.u32 %s3, 4
      %s423 = int_to_ptr.hbm [resolvable:$true] %s422
      %425 = dma.vmem_to_hbm [thread:$0]  %s421, 128, %s423, [#allocation4]
    $region29: #{tpu_custom_call.1} parent=1 // pred_fallthru
      _
    // Predicated region
    $region30: #{tpu_custom_call.1} parent=1 // pred_check
      _
    $region31: #{tpu_custom_call.1} parent=1 // pred_check_branch
      %427 = sbr.rel (0) target = $region33
    $region32: #{tpu_custom_call.1} parent=1 // pred_region
      %429 = dma.done [#allocation4], 128
    $region33: #{tpu_custom_call.1} parent=1 // pred_fallthru
      _
    %430 = vsyncpa [#allocation3], 1
    %431 = vsyncpa [#allocation6], 1
    %432 = vsyncpa [#allocation4], 1

</llo_original>
